<compile_context>
chip_gen: v6e
topology: v6e:2x2x1
jax: 0.10.0
libtpu: 0.0.40
codegen_flags: <defaults>
</compile_context>

<pallas_src>
import jax
import jax.numpy as jnp
from jax.experimental import pallas as pl
from jax.experimental.pallas import tpu as pltpu

# ---- model sizes (small, consistent with the module) ----
N_CLASS = 26      # input_size of the LSTM and output size of Linear
N_HIDDEN = 32     # hidden_size
SEQ = 8           # time steps (n_step)
BATCH = 2


def _text_lstm_kernel(x_ref, w_ref, bias_ref, wout_ref, bout_ref, out_ref):
    """Whole TextLSTM forward in one grid-less kernel.

    x_ref    : (SEQ, BATCH, N_CLASS)              time-major input
    w_ref    : (N_CLASS + N_HIDDEN, 4*N_HIDDEN)   [W_ih^T ; W_hh^T] fused
    bias_ref : (1, 4*N_HIDDEN)                    b_ih + b_hh
    wout_ref : (N_HIDDEN, N_CLASS)                Linear weight, transposed
    bout_ref : (1, N_CLASS)                       Linear bias + extra bias `b`
    out_ref  : (BATCH, N_CLASS)                   final logits
    """
    seq, batch, n_class = x_ref.shape
    H = wout_ref.shape[0]

    # Hoist loop-invariant loads (weights / bias) out of the time loop.
    w = w_ref[...]          # (n_class + H, 4H)
    bias = bias_ref[...]    # (1, 4H)

    def step(t, carry):
        h, c = carry
        x_t = x_ref[t]                                   # (batch, n_class)
        xh = jnp.concatenate([x_t, h], axis=-1)          # (batch, n_class + H)
        # One fused MXU op per step: [x_t | h] @ [W_ih^T ; W_hh^T]
        gates = jnp.dot(xh, w, preferred_element_type=jnp.float32) + bias

        # Full-width activations (one sigmoid + one tanh on the 4H vreg),
        # then slice gates in PyTorch order i, f, g, o.
        sig = jax.nn.sigmoid(gates)
        tnh = jnp.tanh(gates)
        i_g = sig[:, 0 * H:1 * H]
        f_g = sig[:, 1 * H:2 * H]
        g_g = tnh[:, 2 * H:3 * H]
        o_g = sig[:, 3 * H:4 * H]

        c_new = f_g * c + i_g * g_g
        h_new = o_g * jnp.tanh(c_new)
        return h_new, c_new

    h0 = jnp.zeros((batch, H), jnp.float32)
    c0 = jnp.zeros((batch, H), jnp.float32)
    # Fully-unrolled sequential recurrence; h/c stay in vregs (no VMEM scratch).
    h_final, _ = jax.lax.fori_loop(0, seq, step, (h0, c0), unroll=True)

    # model = W(outputs[-1]) + b_out + b   (biases pre-folded in the wrapper)
    out_ref[...] = (jnp.dot(h_final, wout_ref[...],
                            preferred_element_type=jnp.float32)
                    + bout_ref[...])


@jax.jit
def text_lstm_forward(x, w_ih, w_hh, b_ih, b_hh, w_out, b_out, b_extra):
    """x: (batch, seq, n_class) float32 -> (batch, n_class) logits."""
    batch, seq, n_class = x.shape
    n_hidden = w_hh.shape[1]

    # Glue (plain JAX): time-major transpose, fused/transposed weights, folded biases.
    x_tm = jnp.transpose(x, (1, 0, 2))                       # (seq, batch, n_class)
    w_cat = jnp.concatenate([w_ih.T, w_hh.T], axis=0)        # (n_class + H, 4H)
    bias = (b_ih + b_hh).reshape(1, 4 * n_hidden)            # (1, 4H)
    wout_t = w_out.T                                         # (H, n_class)
    bout = (b_out + b_extra).reshape(1, n_class)             # Linear bias + self.b

    return pl.pallas_call(
        _text_lstm_kernel,
        out_shape=jax.ShapeDtypeStruct((batch, n_class), jnp.float32),
        in_specs=[
            pl.BlockSpec(memory_space=pltpu.MemorySpace.VMEM),  # x (time-major)
            pl.BlockSpec(memory_space=pltpu.MemorySpace.VMEM),  # [W_ih^T ; W_hh^T]
            pl.BlockSpec(memory_space=pltpu.MemorySpace.VMEM),  # b_ih + b_hh
            pl.BlockSpec(memory_space=pltpu.MemorySpace.VMEM),  # W_out^T
            pl.BlockSpec(memory_space=pltpu.MemorySpace.VMEM),  # b_out + b
        ],
        out_specs=pl.BlockSpec(memory_space=pltpu.MemorySpace.VMEM),
    )(x_tm, w_cat, bias, wout_t, bout)


def _reference_forward(x, w_ih, w_hh, b_ih, b_hh, w_out, b_out, b_extra):
    """Pure-JAX reference matching torch.nn.LSTM semantics (gate order i,f,g,o)."""
    batch, seq, n_class = x.shape
    n_hidden = w_hh.shape[1]
    h = jnp.zeros((batch, n_hidden), jnp.float32)
    c = jnp.zeros((batch, n_hidden), jnp.float32)
    for t in range(seq):
        g = x[:, t, :] @ w_ih.T + h @ w_hh.T + b_ih + b_hh
        i = jax.nn.sigmoid(g[:, 0 * n_hidden:1 * n_hidden])
        f = jax.nn.sigmoid(g[:, 1 * n_hidden:2 * n_hidden])
        gg = jnp.tanh(g[:, 2 * n_hidden:3 * n_hidden])
        o = jax.nn.sigmoid(g[:, 3 * n_hidden:4 * n_hidden])
        c = f * c + i * gg
        h = o * jnp.tanh(c)
    return h @ w_out.T + b_out + b_extra


if __name__ == "__main__":
    key = jax.random.PRNGKey(0)
    keys = jax.random.split(key, 8)

    # Deterministic parameter init (shapes match nn.LSTM / nn.Linear / Parameter).
    scale = 0.1
    w_ih = scale * jax.random.normal(keys[0], (4 * N_HIDDEN, N_CLASS), jnp.float32)
    w_hh = scale * jax.random.normal(keys[1], (4 * N_HIDDEN, N_HIDDEN), jnp.float32)
    b_ih = scale * jax.random.normal(keys[2], (4 * N_HIDDEN,), jnp.float32)
    b_hh = scale * jax.random.normal(keys[3], (4 * N_HIDDEN,), jnp.float32)
    w_out = scale * jax.random.normal(keys[4], (N_CLASS, N_HIDDEN), jnp.float32)
    b_out = scale * jax.random.normal(keys[5], (N_CLASS,), jnp.float32)
    b_extra = jnp.ones((N_CLASS,), jnp.float32)            # self.b = ones([n_class])

    # Input X: (batch, seq, n_class) float input (as in TextLSTM usage).
    x = jax.random.normal(keys[6], (BATCH, SEQ, N_CLASS), jnp.float32)

    out = text_lstm_forward(x, w_ih, w_hh, b_ih, b_hh, w_out, b_out, b_extra)
    out = jax.block_until_ready(out)

    ref = _reference_forward(x, w_ih, w_hh, b_ih, b_hh, w_out, b_out, b_extra)
    assert out.shape == (BATCH, N_CLASS)
    assert jnp.allclose(out, ref, atol=1e-4, rtol=1e-4), "mismatch vs reference"

    print("KERNEL_OK")
</pallas_src>

<mosaic_0001>
module attributes {stable_mosaic.version = 11 : i64} {
  func.func @_text_lstm_kernel(%arg0: memref<8x2x26xf32, #tpu.memory_space<vmem>>, %arg1: memref<58x128xf32, #tpu.memory_space<vmem>>, %arg2: memref<1x128xf32, #tpu.memory_space<vmem>>, %arg3: memref<32x26xf32, #tpu.memory_space<vmem>>, %arg4: memref<1x26xf32, #tpu.memory_space<vmem>>, %arg5: memref<2x26xf32, #tpu.memory_space<vmem>>) attributes {dimension_semantics = [], scalar_prefetch = 0 : i64, scratch_operands = 0 : i64, tpu.core_type = #tpu.core_type<tc>} {
    %c0 = arith.constant 0 : index
    %c0_0 = arith.constant 0 : index
    %0 = vector.load %arg1[%c0, %c0_0] : memref<58x128xf32, #tpu.memory_space<vmem>>, vector<58x128xf32>
    %c0_1 = arith.constant 0 : index
    %c0_2 = arith.constant 0 : index
    %1 = vector.load %arg2[%c0_1, %c0_2] : memref<1x128xf32, #tpu.memory_space<vmem>>, vector<1x128xf32>
    %cst = arith.constant 0.000000e+00 : f32
    %2 = vector.broadcast %cst : f32 to vector<2x32xf32>
    %cst_3 = arith.constant 0.000000e+00 : f32
    %3 = vector.broadcast %cst_3 : f32 to vector<2x32xf32>
    %c0_i32 = arith.constant 0 : i32
    %4 = arith.index_cast %c0_i32 : i32 to index
    %c0_4 = arith.constant 0 : index
    %c0_5 = arith.constant 0 : index
    %5 = vector.load %arg0[%4, %c0_4, %c0_5] : memref<8x2x26xf32, #tpu.memory_space<vmem>>, vector<1x2x26xf32>
    %6 = vector.shape_cast %5 : vector<1x2x26xf32> to vector<2x26xf32>
    %7 = tpu.concatenate %6, %2 in 1 : vector<2x26xf32>, vector<2x32xf32> -> vector<2x58xf32>
    %cst_6 = arith.constant dense<0.000000e+00> : vector<2x128xf32>
    %8 = tpu.matmul %7, %0, %cst_6 {dimension_numbers = #tpu.dot_dimension_numbers<[1], [0], [0], [1], [0, 0, 1, 1], [], []>} : vector<2x58xf32>, vector<58x128xf32>, vector<2x128xf32> -> vector<2x128xf32>
    %9 = vector.broadcast %1 : vector<1x128xf32> to vector<2x128xf32>
    %10 = arith.addf %8, %9 : vector<2x128xf32>
    %11 = arith.negf %10 : vector<2x128xf32>
    %12 = math.exp %11 : vector<2x128xf32>
    %cst_7 = arith.constant 1.000000e+00 : f32
    %13 = vector.broadcast %cst_7 : f32 to vector<2x128xf32>
    %14 = arith.addf %13, %12 : vector<2x128xf32>
    %15 = arith.divf %13, %14 : vector<2x128xf32>
    %16 = math.tanh %10 : vector<2x128xf32>
    %17 = vector.extract_strided_slice %15 {offsets = [0, 0], sizes = [2, 32], strides = [1, 1]} : vector<2x128xf32> to vector<2x32xf32>
    %18 = vector.extract_strided_slice %15 {offsets = [0, 32], sizes = [2, 32], strides = [1, 1]} : vector<2x128xf32> to vector<2x32xf32>
    %19 = vector.extract_strided_slice %16 {offsets = [0, 64], sizes = [2, 32], strides = [1, 1]} : vector<2x128xf32> to vector<2x32xf32>
    %20 = vector.extract_strided_slice %15 {offsets = [0, 96], sizes = [2, 32], strides = [1, 1]} : vector<2x128xf32> to vector<2x32xf32>
    %21 = arith.mulf %18, %3 : vector<2x32xf32>
    %22 = arith.mulf %17, %19 : vector<2x32xf32>
    %23 = arith.addf %21, %22 : vector<2x32xf32>
    %24 = math.tanh %23 : vector<2x32xf32>
    %25 = arith.mulf %20, %24 : vector<2x32xf32>
    %c1_i32 = arith.constant 1 : i32
    %26 = arith.index_cast %c1_i32 : i32 to index
    %c0_8 = arith.constant 0 : index
    %c0_9 = arith.constant 0 : index
    %27 = vector.load %arg0[%26, %c0_8, %c0_9] : memref<8x2x26xf32, #tpu.memory_space<vmem>>, vector<1x2x26xf32>
    %28 = vector.shape_cast %27 : vector<1x2x26xf32> to vector<2x26xf32>
    %29 = tpu.concatenate %28, %25 in 1 : vector<2x26xf32>, vector<2x32xf32> -> vector<2x58xf32>
    %cst_10 = arith.constant dense<0.000000e+00> : vector<2x128xf32>
    %30 = tpu.matmul %29, %0, %cst_10 {dimension_numbers = #tpu.dot_dimension_numbers<[1], [0], [0], [1], [0, 0, 1, 1], [], []>} : vector<2x58xf32>, vector<58x128xf32>, vector<2x128xf32> -> vector<2x128xf32>
    %31 = vector.broadcast %1 : vector<1x128xf32> to vector<2x128xf32>
    %32 = arith.addf %30, %31 : vector<2x128xf32>
    %33 = arith.negf %32 : vector<2x128xf32>
    %34 = math.exp %33 : vector<2x128xf32>
    %cst_11 = arith.constant 1.000000e+00 : f32
    %35 = vector.broadcast %cst_11 : f32 to vector<2x128xf32>
    %36 = arith.addf %35, %34 : vector<2x128xf32>
    %37 = arith.divf %35, %36 : vector<2x128xf32>
    %38 = math.tanh %32 : vector<2x128xf32>
    %39 = vector.extract_strided_slice %37 {offsets = [0, 0], sizes = [2, 32], strides = [1, 1]} : vector<2x128xf32> to vector<2x32xf32>
    %40 = vector.extract_strided_slice %37 {offsets = [0, 32], sizes = [2, 32], strides = [1, 1]} : vector<2x128xf32> to vector<2x32xf32>
    %41 = vector.extract_strided_slice %38 {offsets = [0, 64], sizes = [2, 32], strides = [1, 1]} : vector<2x128xf32> to vector<2x32xf32>
    %42 = vector.extract_strided_slice %37 {offsets = [0, 96], sizes = [2, 32], strides = [1, 1]} : vector<2x128xf32> to vector<2x32xf32>
    %43 = arith.mulf %40, %23 : vector<2x32xf32>
    %44 = arith.mulf %39, %41 : vector<2x32xf32>
    %45 = arith.addf %43, %44 : vector<2x32xf32>
    %46 = math.tanh %45 : vector<2x32xf32>
    %47 = arith.mulf %42, %46 : vector<2x32xf32>
    %c2_i32 = arith.constant 2 : i32
    %48 = arith.index_cast %c2_i32 : i32 to index
    %c0_12 = arith.constant 0 : index
    %c0_13 = arith.constant 0 : index
    %49 = vector.load %arg0[%48, %c0_12, %c0_13] : memref<8x2x26xf32, #tpu.memory_space<vmem>>, vector<1x2x26xf32>
    %50 = vector.shape_cast %49 : vector<1x2x26xf32> to vector<2x26xf32>
    %51 = tpu.concatenate %50, %47 in 1 : vector<2x26xf32>, vector<2x32xf32> -> vector<2x58xf32>
    %cst_14 = arith.constant dense<0.000000e+00> : vector<2x128xf32>
    %52 = tpu.matmul %51, %0, %cst_14 {dimension_numbers = #tpu.dot_dimension_numbers<[1], [0], [0], [1], [0, 0, 1, 1], [], []>} : vector<2x58xf32>, vector<58x128xf32>, vector<2x128xf32> -> vector<2x128xf32>
    %53 = vector.broadcast %1 : vector<1x128xf32> to vector<2x128xf32>
    %54 = arith.addf %52, %53 : vector<2x128xf32>
    %55 = arith.negf %54 : vector<2x128xf32>
    %56 = math.exp %55 : vector<2x128xf32>
    %cst_15 = arith.constant 1.000000e+00 : f32
    %57 = vector.broadcast %cst_15 : f32 to vector<2x128xf32>
    %58 = arith.addf %57, %56 : vector<2x128xf32>
    %59 = arith.divf %57, %58 : vector<2x128xf32>
    %60 = math.tanh %54 : vector<2x128xf32>
    %61 = vector.extract_strided_slice %59 {offsets = [0, 0], sizes = [2, 32], strides = [1, 1]} : vector<2x128xf32> to vector<2x32xf32>
    %62 = vector.extract_strided_slice %59 {offsets = [0, 32], sizes = [2, 32], strides = [1, 1]} : vector<2x128xf32> to vector<2x32xf32>
    %63 = vector.extract_strided_slice %60 {offsets = [0, 64], sizes = [2, 32], strides = [1, 1]} : vector<2x128xf32> to vector<2x32xf32>
    %64 = vector.extract_strided_slice %59 {offsets = [0, 96], sizes = [2, 32], strides = [1, 1]} : vector<2x128xf32> to vector<2x32xf32>
    %65 = arith.mulf %62, %45 : vector<2x32xf32>
    %66 = arith.mulf %61, %63 : vector<2x32xf32>
    %67 = arith.addf %65, %66 : vector<2x32xf32>
    %68 = math.tanh %67 : vector<2x32xf32>
    %69 = arith.mulf %64, %68 : vector<2x32xf32>
    %c3_i32 = arith.constant 3 : i32
    %70 = arith.index_cast %c3_i32 : i32 to index
    %c0_16 = arith.constant 0 : index
    %c0_17 = arith.constant 0 : index
    %71 = vector.load %arg0[%70, %c0_16, %c0_17] : memref<8x2x26xf32, #tpu.memory_space<vmem>>, vector<1x2x26xf32>
    %72 = vector.shape_cast %71 : vector<1x2x26xf32> to vector<2x26xf32>
    %73 = tpu.concatenate %72, %69 in 1 : vector<2x26xf32>, vector<2x32xf32> -> vector<2x58xf32>
    %cst_18 = arith.constant dense<0.000000e+00> : vector<2x128xf32>
    %74 = tpu.matmul %73, %0, %cst_18 {dimension_numbers = #tpu.dot_dimension_numbers<[1], [0], [0], [1], [0, 0, 1, 1], [], []>} : vector<2x58xf32>, vector<58x128xf32>, vector<2x128xf32> -> vector<2x128xf32>
    %75 = vector.broadcast %1 : vector<1x128xf32> to vector<2x128xf32>
    %76 = arith.addf %74, %75 : vector<2x128xf32>
    %77 = arith.negf %76 : vector<2x128xf32>
    %78 = math.exp %77 : vector<2x128xf32>
    %cst_19 = arith.constant 1.000000e+00 : f32
    %79 = vector.broadcast %cst_19 : f32 to vector<2x128xf32>
    %80 = arith.addf %79, %78 : vector<2x128xf32>
    %81 = arith.divf %79, %80 : vector<2x128xf32>
    %82 = math.tanh %76 : vector<2x128xf32>
    %83 = vector.extract_strided_slice %81 {offsets = [0, 0], sizes = [2, 32], strides = [1, 1]} : vector<2x128xf32> to vector<2x32xf32>
    %84 = vector.extract_strided_slice %81 {offsets = [0, 32], sizes = [2, 32], strides = [1, 1]} : vector<2x128xf32> to vector<2x32xf32>
    %85 = vector.extract_strided_slice %82 {offsets = [0, 64], sizes = [2, 32], strides = [1, 1]} : vector<2x128xf32> to vector<2x32xf32>
    %86 = vector.extract_strided_slice %81 {offsets = [0, 96], sizes = [2, 32], strides = [1, 1]} : vector<2x128xf32> to vector<2x32xf32>
    %87 = arith.mulf %84, %67 : vector<2x32xf32>
    %88 = arith.mulf %83, %85 : vector<2x32xf32>
    %89 = arith.addf %87, %88 : vector<2x32xf32>
    %90 = math.tanh %89 : vector<2x32xf32>
    %91 = arith.mulf %86, %90 : vector<2x32xf32>
    %c4_i32 = arith.constant 4 : i32
    %92 = arith.index_cast %c4_i32 : i32 to index
    %c0_20 = arith.constant 0 : index
    %c0_21 = arith.constant 0 : index
    %93 = vector.load %arg0[%92, %c0_20, %c0_21] : memref<8x2x26xf32, #tpu.memory_space<vmem>>, vector<1x2x26xf32>
    %94 = vector.shape_cast %93 : vector<1x2x26xf32> to vector<2x26xf32>
    %95 = tpu.concatenate %94, %91 in 1 : vector<2x26xf32>, vector<2x32xf32> -> vector<2x58xf32>
    %cst_22 = arith.constant dense<0.000000e+00> : vector<2x128xf32>
    %96 = tpu.matmul %95, %0, %cst_22 {dimension_numbers = #tpu.dot_dimension_numbers<[1], [0], [0], [1], [0, 0, 1, 1], [], []>} : vector<2x58xf32>, vector<58x128xf32>, vector<2x128xf32> -> vector<2x128xf32>
    %97 = vector.broadcast %1 : vector<1x128xf32> to vector<2x128xf32>
    %98 = arith.addf %96, %97 : vector<2x128xf32>
    %99 = arith.negf %98 : vector<2x128xf32>
    %100 = math.exp %99 : vector<2x128xf32>
    %cst_23 = arith.constant 1.000000e+00 : f32
    %101 = vector.broadcast %cst_23 : f32 to vector<2x128xf32>
    %102 = arith.addf %101, %100 : vector<2x128xf32>
    %103 = arith.divf %101, %102 : vector<2x128xf32>
    %104 = math.tanh %98 : vector<2x128xf32>
    %105 = vector.extract_strided_slice %103 {offsets = [0, 0], sizes = [2, 32], strides = [1, 1]} : vector<2x128xf32> to vector<2x32xf32>
    %106 = vector.extract_strided_slice %103 {offsets = [0, 32], sizes = [2, 32], strides = [1, 1]} : vector<2x128xf32> to vector<2x32xf32>
    %107 = vector.extract_strided_slice %104 {offsets = [0, 64], sizes = [2, 32], strides = [1, 1]} : vector<2x128xf32> to vector<2x32xf32>
    %108 = vector.extract_strided_slice %103 {offsets = [0, 96], sizes = [2, 32], strides = [1, 1]} : vector<2x128xf32> to vector<2x32xf32>
    %109 = arith.mulf %106, %89 : vector<2x32xf32>
    %110 = arith.mulf %105, %107 : vector<2x32xf32>
    %111 = arith.addf %109, %110 : vector<2x32xf32>
    %112 = math.tanh %111 : vector<2x32xf32>
    %113 = arith.mulf %108, %112 : vector<2x32xf32>
    %c5_i32 = arith.constant 5 : i32
    %114 = arith.index_cast %c5_i32 : i32 to index
    %c0_24 = arith.constant 0 : index
    %c0_25 = arith.constant 0 : index
    %115 = vector.load %arg0[%114, %c0_24, %c0_25] : memref<8x2x26xf32, #tpu.memory_space<vmem>>, vector<1x2x26xf32>
    %116 = vector.shape_cast %115 : vector<1x2x26xf32> to vector<2x26xf32>
    %117 = tpu.concatenate %116, %113 in 1 : vector<2x26xf32>, vector<2x32xf32> -> vector<2x58xf32>
    %cst_26 = arith.constant dense<0.000000e+00> : vector<2x128xf32>
    %118 = tpu.matmul %117, %0, %cst_26 {dimension_numbers = #tpu.dot_dimension_numbers<[1], [0], [0], [1], [0, 0, 1, 1], [], []>} : vector<2x58xf32>, vector<58x128xf32>, vector<2x128xf32> -> vector<2x128xf32>
    %119 = vector.broadcast %1 : vector<1x128xf32> to vector<2x128xf32>
    %120 = arith.addf %118, %119 : vector<2x128xf32>
    %121 = arith.negf %120 : vector<2x128xf32>
    %122 = math.exp %121 : vector<2x128xf32>
    %cst_27 = arith.constant 1.000000e+00 : f32
    %123 = vector.broadcast %cst_27 : f32 to vector<2x128xf32>
    %124 = arith.addf %123, %122 : vector<2x128xf32>
    %125 = arith.divf %123, %124 : vector<2x128xf32>
    %126 = math.tanh %120 : vector<2x128xf32>
    %127 = vector.extract_strided_slice %125 {offsets = [0, 0], sizes = [2, 32], strides = [1, 1]} : vector<2x128xf32> to vector<2x32xf32>
    %128 = vector.extract_strided_slice %125 {offsets = [0, 32], sizes = [2, 32], strides = [1, 1]} : vector<2x128xf32> to vector<2x32xf32>
    %129 = vector.extract_strided_slice %126 {offsets = [0, 64], sizes = [2, 32], strides = [1, 1]} : vector<2x128xf32> to vector<2x32xf32>
    %130 = vector.extract_strided_slice %125 {offsets = [0, 96], sizes = [2, 32], strides = [1, 1]} : vector<2x128xf32> to vector<2x32xf32>
    %131 = arith.mulf %128, %111 : vector<2x32xf32>
    %132 = arith.mulf %127, %129 : vector<2x32xf32>
    %133 = arith.addf %131, %132 : vector<2x32xf32>
    %134 = math.tanh %133 : vector<2x32xf32>
    %135 = arith.mulf %130, %134 : vector<2x32xf32>
    %c6_i32 = arith.constant 6 : i32
    %136 = arith.index_cast %c6_i32 : i32 to index
    %c0_28 = arith.constant 0 : index
    %c0_29 = arith.constant 0 : index
    %137 = vector.load %arg0[%136, %c0_28, %c0_29] : memref<8x2x26xf32, #tpu.memory_space<vmem>>, vector<1x2x26xf32>
    %138 = vector.shape_cast %137 : vector<1x2x26xf32> to vector<2x26xf32>
    %139 = tpu.concatenate %138, %135 in 1 : vector<2x26xf32>, vector<2x32xf32> -> vector<2x58xf32>
    %cst_30 = arith.constant dense<0.000000e+00> : vector<2x128xf32>
    %140 = tpu.matmul %139, %0, %cst_30 {dimension_numbers = #tpu.dot_dimension_numbers<[1], [0], [0], [1], [0, 0, 1, 1], [], []>} : vector<2x58xf32>, vector<58x128xf32>, vector<2x128xf32> -> vector<2x128xf32>
    %141 = vector.broadcast %1 : vector<1x128xf32> to vector<2x128xf32>
    %142 = arith.addf %140, %141 : vector<2x128xf32>
    %143 = arith.negf %142 : vector<2x128xf32>
    %144 = math.exp %143 : vector<2x128xf32>
    %cst_31 = arith.constant 1.000000e+00 : f32
    %145 = vector.broadcast %cst_31 : f32 to vector<2x128xf32>
    %146 = arith.addf %145, %144 : vector<2x128xf32>
    %147 = arith.divf %145, %146 : vector<2x128xf32>
    %148 = math.tanh %142 : vector<2x128xf32>
    %149 = vector.extract_strided_slice %147 {offsets = [0, 0], sizes = [2, 32], strides = [1, 1]} : vector<2x128xf32> to vector<2x32xf32>
    %150 = vector.extract_strided_slice %147 {offsets = [0, 32], sizes = [2, 32], strides = [1, 1]} : vector<2x128xf32> to vector<2x32xf32>
    %151 = vector.extract_strided_slice %148 {offsets = [0, 64], sizes = [2, 32], strides = [1, 1]} : vector<2x128xf32> to vector<2x32xf32>
    %152 = vector.extract_strided_slice %147 {offsets = [0, 96], sizes = [2, 32], strides = [1, 1]} : vector<2x128xf32> to vector<2x32xf32>
    %153 = arith.mulf %150, %133 : vector<2x32xf32>
    %154 = arith.mulf %149, %151 : vector<2x32xf32>
    %155 = arith.addf %153, %154 : vector<2x32xf32>
    %156 = math.tanh %155 : vector<2x32xf32>
    %157 = arith.mulf %152, %156 : vector<2x32xf32>
    %c7_i32 = arith.constant 7 : i32
    %158 = arith.index_cast %c7_i32 : i32 to index
    %c0_32 = arith.constant 0 : index
    %c0_33 = arith.constant 0 : index
    %159 = vector.load %arg0[%158, %c0_32, %c0_33] : memref<8x2x26xf32, #tpu.memory_space<vmem>>, vector<1x2x26xf32>
    %160 = vector.shape_cast %159 : vector<1x2x26xf32> to vector<2x26xf32>
    %161 = tpu.concatenate %160, %157 in 1 : vector<2x26xf32>, vector<2x32xf32> -> vector<2x58xf32>
    %cst_34 = arith.constant dense<0.000000e+00> : vector<2x128xf32>
    %162 = tpu.matmul %161, %0, %cst_34 {dimension_numbers = #tpu.dot_dimension_numbers<[1], [0], [0], [1], [0, 0, 1, 1], [], []>} : vector<2x58xf32>, vector<58x128xf32>, vector<2x128xf32> -> vector<2x128xf32>
    %163 = vector.broadcast %1 : vector<1x128xf32> to vector<2x128xf32>
    %164 = arith.addf %162, %163 : vector<2x128xf32>
    %165 = arith.negf %164 : vector<2x128xf32>
    %166 = math.exp %165 : vector<2x128xf32>
    %cst_35 = arith.constant 1.000000e+00 : f32
    %167 = vector.broadcast %cst_35 : f32 to vector<2x128xf32>
    %168 = arith.addf %167, %166 : vector<2x128xf32>
    %169 = arith.divf %167, %168 : vector<2x128xf32>
    %170 = math.tanh %164 : vector<2x128xf32>
    %171 = vector.extract_strided_slice %169 {offsets = [0, 0], sizes = [2, 32], strides = [1, 1]} : vector<2x128xf32> to vector<2x32xf32>
    %172 = vector.extract_strided_slice %169 {offsets = [0, 32], sizes = [2, 32], strides = [1, 1]} : vector<2x128xf32> to vector<2x32xf32>
    %173 = vector.extract_strided_slice %170 {offsets = [0, 64], sizes = [2, 32], strides = [1, 1]} : vector<2x128xf32> to vector<2x32xf32>
    %174 = vector.extract_strided_slice %169 {offsets = [0, 96], sizes = [2, 32], strides = [1, 1]} : vector<2x128xf32> to vector<2x32xf32>
    %175 = arith.mulf %172, %155 : vector<2x32xf32>
    %176 = arith.mulf %171, %173 : vector<2x32xf32>
    %177 = arith.addf %175, %176 : vector<2x32xf32>
    %178 = math.tanh %177 : vector<2x32xf32>
    %179 = arith.mulf %174, %178 : vector<2x32xf32>
    %c8_i32 = arith.constant 8 : i32
    %c0_36 = arith.constant 0 : index
    %c0_37 = arith.constant 0 : index
    %180 = vector.load %arg3[%c0_36, %c0_37] : memref<32x26xf32, #tpu.memory_space<vmem>>, vector<32x26xf32>
    %cst_38 = arith.constant dense<0.000000e+00> : vector<2x26xf32>
    %181 = tpu.matmul %179, %180, %cst_38 {dimension_numbers = #tpu.dot_dimension_numbers<[1], [0], [0], [1], [0, 0, 1, 1], [], []>} : vector<2x32xf32>, vector<32x26xf32>, vector<2x26xf32> -> vector<2x26xf32>
    %c0_39 = arith.constant 0 : index
    %c0_40 = arith.constant 0 : index
    %182 = vector.load %arg4[%c0_39, %c0_40] : memref<1x26xf32, #tpu.memory_space<vmem>>, vector<1x26xf32>
    %183 = vector.broadcast %182 : vector<1x26xf32> to vector<2x26xf32>
    %184 = arith.addf %181, %183 : vector<2x26xf32>
    %c0_41 = arith.constant 0 : index
    %c0_42 = arith.constant 0 : index
    %185 = vector.load %arg5[%c0_41, %c0_42] : memref<2x26xf32, #tpu.memory_space<vmem>>, vector<2x26xf32>
    tpu.vector_store %arg5[%c0_41, %c0_42], %184 {strides = array<i32>} : memref<2x26xf32, #tpu.memory_space<vmem>>, vector<2x26xf32>,
    return
  }
}

</mosaic_0001>

<llo_original>
// kernel: text_lstm_forward.1
$region0: #{text_lstm_forward.1}
  #allocation0 [shape = 'u32[]', space=smem, size = 0x4, offset = 0x4, fixed_abs, tag = 'smem constant byte address 0x4 - core index']
  #allocation1 [shape = 'u32[144,128]{1,0:T(1,128)}', space=vmem, size = 0x12000, scoped, tag = 'internal scratch']
  %s0 = inlined_call_operand.vmem [shape: f32[8,2,26], index: 0, kind: input, shape index: {}]
  %s1 = inlined_call_operand.vmem [shape: f32[58,128], index: 1, kind: input, shape index: {}]
  %s2 = inlined_call_operand.vmem [shape: f32[1,128], index: 2, kind: input, shape index: {}]
  %s3 = inlined_call_operand.vmem [shape: f32[32,26], index: 3, kind: input, shape index: {}]
  %s4 = inlined_call_operand.vmem [shape: f32[1,26], index: 4, kind: input, shape index: {}]
  %s5 = inlined_call_operand.hbm [shape: f32[2,26], index: 5, kind: output, shape index: {}]
  %s6 = sld [smem:[#allocation0]]
  $region30: #{text_lstm_forward.1} parent=0
    _
  %s8 = ssub.s32 1, %s6
  %s9 = scalar_select 0, %s8, %s6
  $region1: #{text_lstm_forward.1} parent=0
    #allocation2 [shape = 'u8[1024]{0}', space=vmem, size = 0x400, scoped, tag = 'output window, operand 0, single buffered']
    #allocation3 [shape = 's32[1]{0}', space=sflag, size = 0x4, scoped, tag = 'scoped memory for text_lstm_forward.1']
    %10 = vsyncpa [#allocation3], 0
    // Predicated region
    $region2: #{text_lstm_forward.1} parent=1 // pred_check
      _
    $region3: #{text_lstm_forward.1} parent=1 // pred_check_branch
      %12 = sbr.rel (0) target = $region5
    $region4: #{text_lstm_forward.1} parent=1 // pred_region
      _
    $region5: #{text_lstm_forward.1} parent=1 // pred_fallthru
      _
    // Predicated region
    $region6: #{text_lstm_forward.1} parent=1 // pred_check
      _
    $region7: #{text_lstm_forward.1} parent=1 // pred_check_branch
      %14 = sbr.rel (0) target = $region9
    $region8: #{text_lstm_forward.1} parent=1 // pred_region
      _
    $region9: #{text_lstm_forward.1} parent=1 // pred_fallthru
      _
    // Predicated region
    $region10: #{text_lstm_forward.1} parent=1 // pred_check
      _
    $region11: #{text_lstm_forward.1} parent=1 // pred_check_branch
      %16 = sbr.rel (0) target = $region13
    $region12: #{text_lstm_forward.1} parent=1 // pred_region
      _
    $region13: #{text_lstm_forward.1} parent=1 // pred_fallthru
      _
    // Predicated region
    $region14: #{text_lstm_forward.1} parent=1 // pred_check
      _
    $region15: #{text_lstm_forward.1} parent=1 // pred_check_branch
      %18 = sbr.rel (0) target = $region17
    $region16: #{text_lstm_forward.1} parent=1 // pred_region
      _
    $region17: #{text_lstm_forward.1} parent=1 // pred_fallthru
      _
    // Predicated region
    $region18: #{text_lstm_forward.1} parent=1 // pred_check
      _
    $region19: #{text_lstm_forward.1} parent=1 // pred_check_branch
      %20 = sbr.rel (0) target = $region21
    $region20: #{text_lstm_forward.1} parent=1 // pred_region
      _
    $region21: #{text_lstm_forward.1} parent=1 // pred_fallthru
      _
    %v21 = vld [vmem:[%s1] sm:$0xff]
    %v22 = vld [vmem:[%s1 + $0x8] sm:$0xff]
    %v23 = vld [vmem:[%s1 + $0x10] sm:$0xff]
    %v24 = vld [vmem:[%s1 + $0x18] sm:$0xff]
    %v25 = vld [vmem:[%s1 + $0x20] sm:$0xff]
    %v26 = vld [vmem:[%s1 + $0x28] sm:$0xff]
    %v27 = vld [vmem:[%s1 + $0x30] sm:$0xff]
    %v28 = vld [vmem:[%s1 + $0x38] sm:$0x3]
    %v29 = vld [vmem:[%s2] sm:$0x1]
    %v30 = vld [vmem:[%s0] sm:$0x3]
    %vm31 = vcmask 211968
    %v32 = vsel %vm31, %v30, 0.0
    %v34 = vlaneseq
    %v35 = vshrl.u32 %v34, 7
    %v36 = vsub.s32 0, %v35
    %v37 = vrot.slane %v29, %v36
    %vm39 = vcmask 474112
    %v41 = vsel %vm39, %v32, 0
    %vm43 = vcmask 1041408
    %v45 = vsel %vm43, %v28, 0
    %47 = vmatprep.subr.mxu0 0.0
    %48 = vmatpush1.msra.mxu0 0.0
    %49 = vmatprep.subr.mxu0 0.0
    %50 = vmatpush1.msra.mxu0 0.0
    %51 = vmatprep.subr.mxu0 0.0
    %52 = vmatpush1.msra.mxu0 0.0
    %53 = vmatprep.subr.mxu0 0.0
    %54 = vmatpush1.msra.mxu0 0.0
    %55 = vmatprep.subr.mxu0 0.0
    %56 = vmatpush1.msra.mxu0 0.0
    %57 = vmatprep.subr.mxu0 0.0
    %58 = vmatpush1.msra.mxu0 0.0
    %59 = vmatprep.subr.mxu0 0.0
    %60 = vmatpush1.msra.mxu0 0.0
    %61 = vmatprep.subr.mxu0 0.0
    %62 = vmatpush1.msra.mxu0 0.0
    %63 = vmatprep.subr.mxu0 0.0
    %64 = vmatpush1.msra.mxu0 %v45
    %65 = vmatprep.subr.mxu0 0.0
    %66 = vmatpush1.msra.mxu0 %v27
    %67 = vmatprep.subr.mxu0 0.0
    %68 = vmatpush1.msra.mxu0 %v26
    %69 = vmatprep.subr.mxu0 0.0
    %70 = vmatpush1.msra.mxu0 %v25
    %71 = vmatprep.subr.mxu0 0.0
    %72 = vmatpush1.msra.mxu0 %v24
    %73 = vmatprep.subr.mxu0 0.0
    %74 = vmatpush1.msra.mxu0 %v23
    %75 = vmatprep.subr.mxu0 0.0
    %76 = vmatpush1.msra.mxu0 %v22
    %77 = vmatprep.subr.mxu0 0.0
    %78 = vmatpush1.msra.mxu0 %v21
    %79 = vmatprep.subr.mxu0 0.0
    %80 = vmatpush2.msra.mxu0 0.0
    %81 = vmatprep.subr.mxu0 0.0
    %82 = vmatpush2.msra.mxu0 0.0
    %83 = vmatprep.subr.mxu0 0.0
    %84 = vmatpush2.msra.mxu0 0.0
    %85 = vmatprep.subr.mxu0 0.0
    %86 = vmatpush2.msra.mxu0 0.0
    %87 = vmatprep.subr.mxu0 0.0
    %88 = vmatpush2.msra.mxu0 0.0
    %89 = vmatprep.subr.mxu0 0.0
    %90 = vmatpush2.msra.mxu0 0.0
    %91 = vmatprep.subr.mxu0 0.0
    %92 = vmatpush2.msra.mxu0 0.0
    %93 = vmatprep.subr.mxu0 0.0
    %94 = vmatpush2.msra.mxu0 0.0
    %95 = vmatprep.subr.mxu0 0.0
    %96 = vmatpush2.msra.mxu0 0.0
    %97 = vmatprep.subr.mxu0 0.0
    %98 = vmatpush2.msra.mxu0 0.0
    %99 = vmatprep.subr.mxu0 0.0
    %100 = vmatpush2.msra.mxu0 0.0
    %101 = vmatprep.subr.mxu0 0.0
    %102 = vmatpush2.msra.mxu0 0.0
    %103 = vmatprep.subr.mxu0 0.0
    %104 = vmatpush2.msra.mxu0 0.0
    %105 = vmatprep.subr.mxu0 0.0
    %106 = vmatpush2.msra.mxu0 0.0
    %107 = vmatprep.subr.mxu0 0.0
    %108 = vmatpush2.msra.mxu0 0.0
    %109 = vmatprep.subr.mxu0 0.0
    %110 = vmatpush2.msra.mxu0 0.0
    %111 = vmatprep.mubr.f32.mxu0 0.0
    %112 = vmatmul.mubr.f32.gmra.mxu0 %v41
    %v113 = vpop.f32.mrf.mxu0
    %v114 = vadd.f32 %v37, %v113
    %v115 = vpop.f32.mrf.mxu0
    %116 = vdwg.mxu0
    %v117 = vxor.u32 %v114, 2147483648
    %v118 = vmul.f32 %v117, 1.442695
    %v119 = vpow.pop %v118
    %v120 = vadd.f32 %v119, 1.0
    %v121 = vrcp.pop %v120
    %v122 = vmul.f32 1.0, %v121
    %v123 = vtanh.pop %v114
    %v124 = vmul.f32 %v122, 0.0
    %126 = vrot.lane.b32.xlu0 %v123, 64
    %v127 = vpop.permute.xlu0 %126
    %v129 = vmul.f32 %v122, %v127
    %131 = vrot.lane.b32.xlu0 %v129, 32
    %v132 = vpop.permute.xlu0 %131
    %v134 = vadd.f32 %v124, %v132
    %v135 = vtanh.pop %v134
    %137 = vrot.lane.b32.xlu0 %v135, 64
    %v138 = vpop.permute.xlu0 %137
    %v140 = vmul.f32 %v122, %v138
    %s141 = scalar_lea.vmem %s0, 2
    %v142 = vld [vmem:[%s141] sm:$0x3]
    %144 = vrot.lane.b32.xlu0 %v140, 58
    %v145 = vpop.permute.xlu0 %144
    %v147 = vsel %vm31, %v142, %v145
    %v149 = vsel %vm39, %v147, 0
    %151 = vmatprep.subr.mxu0 0.0
    %152 = vmatpush1.msra.mxu0 0.0
    %153 = vmatprep.subr.mxu0 0.0
    %154 = vmatpush1.msra.mxu0 0.0
    %155 = vmatprep.subr.mxu0 0.0
    %156 = vmatpush1.msra.mxu0 0.0
    %157 = vmatprep.subr.mxu0 0.0
    %158 = vmatpush1.msra.mxu0 0.0
    %159 = vmatprep.subr.mxu0 0.0
    %160 = vmatpush1.msra.mxu0 0.0
    %161 = vmatprep.subr.mxu0 0.0
    %162 = vmatpush1.msra.mxu0 0.0
    %163 = vmatprep.subr.mxu0 0.0
    %164 = vmatpush1.msra.mxu0 0.0
    %165 = vmatprep.subr.mxu0 0.0
    %166 = vmatpush1.msra.mxu0 0.0
    %167 = vmatprep.subr.mxu0 0.0
    %168 = vmatpush1.msra.mxu0 %v45
    %169 = vmatprep.subr.mxu0 0.0
    %170 = vmatpush1.msra.mxu0 %v27
    %171 = vmatprep.subr.mxu0 0.0
    %172 = vmatpush1.msra.mxu0 %v26
    %173 = vmatprep.subr.mxu0 0.0
    %174 = vmatpush1.msra.mxu0 %v25
    %175 = vmatprep.subr.mxu0 0.0
    %176 = vmatpush1.msra.mxu0 %v24
    %177 = vmatprep.subr.mxu0 0.0
    %178 = vmatpush1.msra.mxu0 %v23
    %179 = vmatprep.subr.mxu0 0.0
    %180 = vmatpush1.msra.mxu0 %v22
    %181 = vmatprep.subr.mxu0 0.0
    %182 = vmatpush1.msra.mxu0 %v21
    %183 = vmatprep.subr.mxu0 0.0
    %184 = vmatpush2.msra.mxu0 0.0
    %185 = vmatprep.subr.mxu0 0.0
    %186 = vmatpush2.msra.mxu0 0.0
    %187 = vmatprep.subr.mxu0 0.0
    %188 = vmatpush2.msra.mxu0 0.0
    %189 = vmatprep.subr.mxu0 0.0
    %190 = vmatpush2.msra.mxu0 0.0
    %191 = vmatprep.subr.mxu0 0.0
    %192 = vmatpush2.msra.mxu0 0.0
    %193 = vmatprep.subr.mxu0 0.0
    %194 = vmatpush2.msra.mxu0 0.0
    %195 = vmatprep.subr.mxu0 0.0
    %196 = vmatpush2.msra.mxu0 0.0
    %197 = vmatprep.subr.mxu0 0.0
    %198 = vmatpush2.msra.mxu0 0.0
    %199 = vmatprep.subr.mxu0 0.0
    %200 = vmatpush2.msra.mxu0 0.0
    %201 = vmatprep.subr.mxu0 0.0
    %202 = vmatpush2.msra.mxu0 0.0
    %203 = vmatprep.subr.mxu0 0.0
    %204 = vmatpush2.msra.mxu0 0.0
    %205 = vmatprep.subr.mxu0 0.0
    %206 = vmatpush2.msra.mxu0 0.0
    %207 = vmatprep.subr.mxu0 0.0
    %208 = vmatpush2.msra.mxu0 0.0
    %209 = vmatprep.subr.mxu0 0.0
    %210 = vmatpush2.msra.mxu0 0.0
    %211 = vmatprep.subr.mxu0 0.0
    %212 = vmatpush2.msra.mxu0 0.0
    %213 = vmatprep.subr.mxu0 0.0
    %214 = vmatpush2.msra.mxu0 0.0
    %215 = vmatprep.mubr.f32.mxu0 0.0
    %216 = vmatmul.mubr.f32.gmra.mxu0 %v149
    %v217 = vpop.f32.mrf.mxu0
    %v218 = vadd.f32 %v37, %v217
    %v219 = vpop.f32.mrf.mxu0
    %220 = vdwg.mxu0
    %v221 = vxor.u32 %v218, 2147483648
    %v222 = vmul.f32 %v221, 1.442695
    %v223 = vpow.pop %v222
    %v224 = vadd.f32 %v223, 1.0
    %v225 = vrcp.pop %v224
    %v226 = vmul.f32 1.0, %v225
    %v227 = vtanh.pop %v218
    %v228 = vmul.f32 %v226, %v134
    %230 = vrot.lane.b32.xlu0 %v227, 64
    %v231 = vpop.permute.xlu0 %230
    %v233 = vmul.f32 %v226, %v231
    %235 = vrot.lane.b32.xlu0 %v233, 32
    %v236 = vpop.permute.xlu0 %235
    %v238 = vadd.f32 %v228, %v236
    %v239 = vtanh.pop %v238
    %241 = vrot.lane.b32.xlu0 %v239, 64
    %v242 = vpop.permute.xlu0 %241
    %v244 = vmul.f32 %v226, %v242
    %s245 = scalar_lea.vmem %s0, 4
    %v246 = vld [vmem:[%s245] sm:$0x3]
    %248 = vrot.lane.b32.xlu0 %v244, 58
    %v249 = vpop.permute.xlu0 %248
    %v251 = vsel %vm31, %v246, %v249
    %v253 = vsel %vm39, %v251, 0
    %255 = vmatprep.subr.mxu0 0.0
    %256 = vmatpush1.msra.mxu0 0.0
    %257 = vmatprep.subr.mxu0 0.0
    %258 = vmatpush1.msra.mxu0 0.0
    %259 = vmatprep.subr.mxu0 0.0
    %260 = vmatpush1.msra.mxu0 0.0
    %261 = vmatprep.subr.mxu0 0.0
    %262 = vmatpush1.msra.mxu0 0.0
    %263 = vmatprep.subr.mxu0 0.0
    %264 = vmatpush1.msra.mxu0 0.0
    %265 = vmatprep.subr.mxu0 0.0
    %266 = vmatpush1.msra.mxu0 0.0
    %267 = vmatprep.subr.mxu0 0.0
    %268 = vmatpush1.msra.mxu0 0.0
    %269 = vmatprep.subr.mxu0 0.0
    %270 = vmatpush1.msra.mxu0 0.0
    %271 = vmatprep.subr.mxu0 0.0
    %272 = vmatpush1.msra.mxu0 %v45
    %273 = vmatprep.subr.mxu0 0.0
    %274 = vmatpush1.msra.mxu0 %v27
    %275 = vmatprep.subr.mxu0 0.0
    %276 = vmatpush1.msra.mxu0 %v26
    %277 = vmatprep.subr.mxu0 0.0
    %278 = vmatpush1.msra.mxu0 %v25
    %279 = vmatprep.subr.mxu0 0.0
    %280 = vmatpush1.msra.mxu0 %v24
    %281 = vmatprep.subr.mxu0 0.0
    %282 = vmatpush1.msra.mxu0 %v23
    %283 = vmatprep.subr.mxu0 0.0
    %284 = vmatpush1.msra.mxu0 %v22
    %285 = vmatprep.subr.mxu0 0.0
    %286 = vmatpush1.msra.mxu0 %v21
    %287 = vmatprep.subr.mxu0 0.0
    %288 = vmatpush2.msra.mxu0 0.0
    %289 = vmatprep.subr.mxu0 0.0
    %290 = vmatpush2.msra.mxu0 0.0
    %291 = vmatprep.subr.mxu0 0.0
    %292 = vmatpush2.msra.mxu0 0.0
    %293 = vmatprep.subr.mxu0 0.0
    %294 = vmatpush2.msra.mxu0 0.0
    %295 = vmatprep.subr.mxu0 0.0
    %296 = vmatpush2.msra.mxu0 0.0
    %297 = vmatprep.subr.mxu0 0.0
    %298 = vmatpush2.msra.mxu0 0.0
    %299 = vmatprep.subr.mxu0 0.0
    %300 = vmatpush2.msra.mxu0 0.0
    %301 = vmatprep.subr.mxu0 0.0
    %302 = vmatpush2.msra.mxu0 0.0
    %303 = vmatprep.subr.mxu0 0.0
    %304 = vmatpush2.msra.mxu0 0.0
    %305 = vmatprep.subr.mxu0 0.0
    %306 = vmatpush2.msra.mxu0 0.0
    %307 = vmatprep.subr.mxu0 0.0
    %308 = vmatpush2.msra.mxu0 0.0
    %309 = vmatprep.subr.mxu0 0.0
    %310 = vmatpush2.msra.mxu0 0.0
    %311 = vmatprep.subr.mxu0 0.0
    %312 = vmatpush2.msra.mxu0 0.0
    %313 = vmatprep.subr.mxu0 0.0
    %314 = vmatpush2.msra.mxu0 0.0
    %315 = vmatprep.subr.mxu0 0.0
    %316 = vmatpush2.msra.mxu0 0.0
    %317 = vmatprep.subr.mxu0 0.0
    %318 = vmatpush2.msra.mxu0 0.0
    %319 = vmatprep.mubr.f32.mxu0 0.0
    %320 = vmatmul.mubr.f32.gmra.mxu0 %v253
    %v321 = vpop.f32.mrf.mxu0
    %v322 = vadd.f32 %v37, %v321
    %v323 = vpop.f32.mrf.mxu0
    %324 = vdwg.mxu0
    %v325 = vxor.u32 %v322, 2147483648
    %v326 = vmul.f32 %v325, 1.442695
    %v327 = vpow.pop %v326
    %v328 = vadd.f32 %v327, 1.0
    %v329 = vrcp.pop %v328
    %v330 = vmul.f32 1.0, %v329
    %v331 = vtanh.pop %v322
    %v332 = vmul.f32 %v330, %v238
    %334 = vrot.lane.b32.xlu0 %v331, 64
    %v335 = vpop.permute.xlu0 %334
    %v337 = vmul.f32 %v330, %v335
    %339 = vrot.lane.b32.xlu0 %v337, 32
    %v340 = vpop.permute.xlu0 %339
    %v342 = vadd.f32 %v332, %v340
    %v343 = vtanh.pop %v342
    %345 = vrot.lane.b32.xlu0 %v343, 64
    %v346 = vpop.permute.xlu0 %345
    %v348 = vmul.f32 %v330, %v346
    %s349 = scalar_lea.vmem %s0, 6
    %v350 = vld [vmem:[%s349] sm:$0x3]
    %352 = vrot.lane.b32.xlu0 %v348, 58
    %v353 = vpop.permute.xlu0 %352
    %v355 = vsel %vm31, %v350, %v353
    %v357 = vsel %vm39, %v355, 0
    %359 = vmatprep.subr.mxu0 0.0
    %360 = vmatpush1.msra.mxu0 0.0
    %361 = vmatprep.subr.mxu0 0.0
    %362 = vmatpush1.msra.mxu0 0.0
    %363 = vmatprep.subr.mxu0 0.0
    %364 = vmatpush1.msra.mxu0 0.0
    %365 = vmatprep.subr.mxu0 0.0
    %366 = vmatpush1.msra.mxu0 0.0
    %367 = vmatprep.subr.mxu0 0.0
    %368 = vmatpush1.msra.mxu0 0.0
    %369 = vmatprep.subr.mxu0 0.0
    %370 = vmatpush1.msra.mxu0 0.0
    %371 = vmatprep.subr.mxu0 0.0
    %372 = vmatpush1.msra.mxu0 0.0
    %373 = vmatprep.subr.mxu0 0.0
    %374 = vmatpush1.msra.mxu0 0.0
    %375 = vmatprep.subr.mxu0 0.0
    %376 = vmatpush1.msra.mxu0 %v45
    %377 = vmatprep.subr.mxu0 0.0
    %378 = vmatpush1.msra.mxu0 %v27
    %379 = vmatprep.subr.mxu0 0.0
    %380 = vmatpush1.msra.mxu0 %v26
    %381 = vmatprep.subr.mxu0 0.0
    %382 = vmatpush1.msra.mxu0 %v25
    %383 = vmatprep.subr.mxu0 0.0
    %384 = vmatpush1.msra.mxu0 %v24
    %385 = vmatprep.subr.mxu0 0.0
    %386 = vmatpush1.msra.mxu0 %v23
    %387 = vmatprep.subr.mxu0 0.0
    %388 = vmatpush1.msra.mxu0 %v22
    %389 = vmatprep.subr.mxu0 0.0
    %390 = vmatpush1.msra.mxu0 %v21
    %391 = vmatprep.subr.mxu0 0.0
    %392 = vmatpush2.msra.mxu0 0.0
    %393 = vmatprep.subr.mxu0 0.0
    %394 = vmatpush2.msra.mxu0 0.0
    %395 = vmatprep.subr.mxu0 0.0
    %396 = vmatpush2.msra.mxu0 0.0
    %397 = vmatprep.subr.mxu0 0.0
    %398 = vmatpush2.msra.mxu0 0.0
    %399 = vmatprep.subr.mxu0 0.0
    %400 = vmatpush2.msra.mxu0 0.0
    %401 = vmatprep.subr.mxu0 0.0
    %402 = vmatpush2.msra.mxu0 0.0
    %403 = vmatprep.subr.mxu0 0.0
    %404 = vmatpush2.msra.mxu0 0.0
    %405 = vmatprep.subr.mxu0 0.0
    %406 = vmatpush2.msra.mxu0 0.0
    %407 = vmatprep.subr.mxu0 0.0
    %408 = vmatpush2.msra.mxu0 0.0
    %409 = vmatprep.subr.mxu0 0.0
    %410 = vmatpush2.msra.mxu0 0.0
    %411 = vmatprep.subr.mxu0 0.0
    %412 = vmatpush2.msra.mxu0 0.0
    %413 = vmatprep.subr.mxu0 0.0
    %414 = vmatpush2.msra.mxu0 0.0
    %415 = vmatprep.subr.mxu0 0.0
    %416 = vmatpush2.msra.mxu0 0.0
    %417 = vmatprep.subr.mxu0 0.0
    %418 = vmatpush2.msra.mxu0 0.0
    %419 = vmatprep.subr.mxu0 0.0
    %420 = vmatpush2.msra.mxu0 0.0
    %421 = vmatprep.subr.mxu0 0.0
    %422 = vmatpush2.msra.mxu0 0.0
    %423 = vmatprep.mubr.f32.mxu0 0.0
    %424 = vmatmul.mubr.f32.gmra.mxu0 %v357
    %v425 = vpop.f32.mrf.mxu0
    %v426 = vadd.f32 %v37, %v425
    %v427 = vpop.f32.mrf.mxu0
    %428 = vdwg.mxu0
    %v429 = vxor.u32 %v426, 2147483648
    %v430 = vmul.f32 %v429, 1.442695
    %v431 = vpow.pop %v430
    %v432 = vadd.f32 %v431, 1.0
    %v433 = vrcp.pop %v432
    %v434 = vmul.f32 1.0, %v433
    %v435 = vtanh.pop %v426
    %v436 = vmul.f32 %v434, %v342
    %438 = vrot.lane.b32.xlu0 %v435, 64
    %v439 = vpop.permute.xlu0 %438
    %v441 = vmul.f32 %v434, %v439
    %443 = vrot.lane.b32.xlu0 %v441, 32
    %v444 = vpop.permute.xlu0 %443
    %v446 = vadd.f32 %v436, %v444
    %v447 = vtanh.pop %v446
    %449 = vrot.lane.b32.xlu0 %v447, 64
    %v450 = vpop.permute.xlu0 %449
    %v452 = vmul.f32 %v434, %v450
    %s453 = scalar_lea.vmem %s0, 8
    %v454 = vld [vmem:[%s453] sm:$0x3]
    %456 = vrot.lane.b32.xlu0 %v452, 58
    %v457 = vpop.permute.xlu0 %456
    %v459 = vsel %vm31, %v454, %v457
    %v461 = vsel %vm39, %v459, 0
    %463 = vmatprep.subr.mxu0 0.0
    %464 = vmatpush1.msra.mxu0 0.0
    %465 = vmatprep.subr.mxu0 0.0
    %466 = vmatpush1.msra.mxu0 0.0
    %467 = vmatprep.subr.mxu0 0.0
    %468 = vmatpush1.msra.mxu0 0.0
    %469 = vmatprep.subr.mxu0 0.0
    %470 = vmatpush1.msra.mxu0 0.0
    %471 = vmatprep.subr.mxu0 0.0
    %472 = vmatpush1.msra.mxu0 0.0
    %473 = vmatprep.subr.mxu0 0.0
    %474 = vmatpush1.msra.mxu0 0.0
    %475 = vmatprep.subr.mxu0 0.0
    %476 = vmatpush1.msra.mxu0 0.0
    %477 = vmatprep.subr.mxu0 0.0
    %478 = vmatpush1.msra.mxu0 0.0
    %479 = vmatprep.subr.mxu0 0.0
    %480 = vmatpush1.msra.mxu0 %v45
    %481 = vmatprep.subr.mxu0 0.0
    %482 = vmatpush1.msra.mxu0 %v27
    %483 = vmatprep.subr.mxu0 0.0
    %484 = vmatpush1.msra.mxu0 %v26
    %485 = vmatprep.subr.mxu0 0.0
    %486 = vmatpush1.msra.mxu0 %v25
    %487 = vmatprep.subr.mxu0 0.0
    %488 = vmatpush1.msra.mxu0 %v24
    %489 = vmatprep.subr.mxu0 0.0
    %490 = vmatpush1.msra.mxu0 %v23
    %491 = vmatprep.subr.mxu0 0.0
    %492 = vmatpush1.msra.mxu0 %v22
    %493 = vmatprep.subr.mxu0 0.0
    %494 = vmatpush1.msra.mxu0 %v21
    %495 = vmatprep.subr.mxu0 0.0
    %496 = vmatpush2.msra.mxu0 0.0
    %497 = vmatprep.subr.mxu0 0.0
    %498 = vmatpush2.msra.mxu0 0.0
    %499 = vmatprep.subr.mxu0 0.0
    %500 = vmatpush2.msra.mxu0 0.0
    %501 = vmatprep.subr.mxu0 0.0
    %502 = vmatpush2.msra.mxu0 0.0
    %503 = vmatprep.subr.mxu0 0.0
    %504 = vmatpush2.msra.mxu0 0.0
    %505 = vmatprep.subr.mxu0 0.0
    %506 = vmatpush2.msra.mxu0 0.0
    %507 = vmatprep.subr.mxu0 0.0
    %508 = vmatpush2.msra.mxu0 0.0
    %509 = vmatprep.subr.mxu0 0.0
    %510 = vmatpush2.msra.mxu0 0.0
    %511 = vmatprep.subr.mxu0 0.0
    %512 = vmatpush2.msra.mxu0 0.0
    %513 = vmatprep.subr.mxu0 0.0
    %514 = vmatpush2.msra.mxu0 0.0
    %515 = vmatprep.subr.mxu0 0.0
    %516 = vmatpush2.msra.mxu0 0.0
    %517 = vmatprep.subr.mxu0 0.0
    %518 = vmatpush2.msra.mxu0 0.0
    %519 = vmatprep.subr.mxu0 0.0
    %520 = vmatpush2.msra.mxu0 0.0
    %521 = vmatprep.subr.mxu0 0.0
    %522 = vmatpush2.msra.mxu0 0.0
    %523 = vmatprep.subr.mxu0 0.0
    %524 = vmatpush2.msra.mxu0 0.0
    %525 = vmatprep.subr.mxu0 0.0
    %526 = vmatpush2.msra.mxu0 0.0
    %527 = vmatprep.mubr.f32.mxu0 0.0
    %528 = vmatmul.mubr.f32.gmra.mxu0 %v461
    %v529 = vpop.f32.mrf.mxu0
    %v530 = vadd.f32 %v37, %v529
    %v531 = vpop.f32.mrf.mxu0
    %532 = vdwg.mxu0
    %v533 = vxor.u32 %v530, 2147483648
    %v534 = vmul.f32 %v533, 1.442695
    %v535 = vpow.pop %v534
    %v536 = vadd.f32 %v535, 1.0
    %v537 = vrcp.pop %v536
    %v538 = vmul.f32 1.0, %v537
    %v539 = vtanh.pop %v530
    %v540 = vmul.f32 %v538, %v446
    %542 = vrot.lane.b32.xlu0 %v539, 64
    %v543 = vpop.permute.xlu0 %542
    %v545 = vmul.f32 %v538, %v543
    %547 = vrot.lane.b32.xlu0 %v545, 32
    %v548 = vpop.permute.xlu0 %547
    %v550 = vadd.f32 %v540, %v548
    %v551 = vtanh.pop %v550
    %553 = vrot.lane.b32.xlu0 %v551, 64
    %v554 = vpop.permute.xlu0 %553
    %v556 = vmul.f32 %v538, %v554
    %s557 = scalar_lea.vmem %s0, 10
    %v558 = vld [vmem:[%s557] sm:$0x3]
    %560 = vrot.lane.b32.xlu0 %v556, 58
    %v561 = vpop.permute.xlu0 %560
    %v563 = vsel %vm31, %v558, %v561
    %v565 = vsel %vm39, %v563, 0
    %567 = vmatprep.subr.mxu0 0.0
    %568 = vmatpush1.msra.mxu0 0.0
    %569 = vmatprep.subr.mxu0 0.0
    %570 = vmatpush1.msra.mxu0 0.0
    %571 = vmatprep.subr.mxu0 0.0
    %572 = vmatpush1.msra.mxu0 0.0
    %573 = vmatprep.subr.mxu0 0.0
    %574 = vmatpush1.msra.mxu0 0.0
    %575 = vmatprep.subr.mxu0 0.0
    %576 = vmatpush1.msra.mxu0 0.0
    %577 = vmatprep.subr.mxu0 0.0
    %578 = vmatpush1.msra.mxu0 0.0
    %579 = vmatprep.subr.mxu0 0.0
    %580 = vmatpush1.msra.mxu0 0.0
    %581 = vmatprep.subr.mxu0 0.0
    %582 = vmatpush1.msra.mxu0 0.0
    %583 = vmatprep.subr.mxu0 0.0
    %584 = vmatpush1.msra.mxu0 %v45
    %585 = vmatprep.subr.mxu0 0.0
    %586 = vmatpush1.msra.mxu0 %v27
    %587 = vmatprep.subr.mxu0 0.0
    %588 = vmatpush1.msra.mxu0 %v26
    %589 = vmatprep.subr.mxu0 0.0
    %590 = vmatpush1.msra.mxu0 %v25
    %591 = vmatprep.subr.mxu0 0.0
    %592 = vmatpush1.msra.mxu0 %v24
    %593 = vmatprep.subr.mxu0 0.0
    %594 = vmatpush1.msra.mxu0 %v23
    %595 = vmatprep.subr.mxu0 0.0
    %596 = vmatpush1.msra.mxu0 %v22
    %597 = vmatprep.subr.mxu0 0.0
    %598 = vmatpush1.msra.mxu0 %v21
    %599 = vmatprep.subr.mxu0 0.0
    %600 = vmatpush2.msra.mxu0 0.0
    %601 = vmatprep.subr.mxu0 0.0
    %602 = vmatpush2.msra.mxu0 0.0
    %603 = vmatprep.subr.mxu0 0.0
    %604 = vmatpush2.msra.mxu0 0.0
    %605 = vmatprep.subr.mxu0 0.0
    %606 = vmatpush2.msra.mxu0 0.0
    %607 = vmatprep.subr.mxu0 0.0
    %608 = vmatpush2.msra.mxu0 0.0
    %609 = vmatprep.subr.mxu0 0.0
    %610 = vmatpush2.msra.mxu0 0.0
    %611 = vmatprep.subr.mxu0 0.0
    %612 = vmatpush2.msra.mxu0 0.0
    %613 = vmatprep.subr.mxu0 0.0
    %614 = vmatpush2.msra.mxu0 0.0
    %615 = vmatprep.subr.mxu0 0.0
    %616 = vmatpush2.msra.mxu0 0.0
    %617 = vmatprep.subr.mxu0 0.0
    %618 = vmatpush2.msra.mxu0 0.0
    %619 = vmatprep.subr.mxu0 0.0
    %620 = vmatpush2.msra.mxu0 0.0
    %621 = vmatprep.subr.mxu0 0.0
    %622 = vmatpush2.msra.mxu0 0.0
    %623 = vmatprep.subr.mxu0 0.0
    %624 = vmatpush2.msra.mxu0 0.0
    %625 = vmatprep.subr.mxu0 0.0
    %626 = vmatpush2.msra.mxu0 0.0
    %627 = vmatprep.subr.mxu0 0.0
    %628 = vmatpush2.msra.mxu0 0.0
    %629 = vmatprep.subr.mxu0 0.0
    %630 = vmatpush2.msra.mxu0 0.0
    %631 = vmatprep.mubr.f32.mxu0 0.0
    %632 = vmatmul.mubr.f32.gmra.mxu0 %v565
    %v633 = vpop.f32.mrf.mxu0
    %v634 = vadd.f32 %v37, %v633
    %v635 = vpop.f32.mrf.mxu0
    %636 = vdwg.mxu0
    %v637 = vxor.u32 %v634, 2147483648
    %v638 = vmul.f32 %v637, 1.442695
    %v639 = vpow.pop %v638
    %v640 = vadd.f32 %v639, 1.0
    %v641 = vrcp.pop %v640
    %v642 = vmul.f32 1.0, %v641
    %v643 = vtanh.pop %v634
    %v644 = vmul.f32 %v642, %v550
    %646 = vrot.lane.b32.xlu0 %v643, 64
    %v647 = vpop.permute.xlu0 %646
    %v649 = vmul.f32 %v642, %v647
    %651 = vrot.lane.b32.xlu0 %v649, 32
    %v652 = vpop.permute.xlu0 %651
    %v654 = vadd.f32 %v644, %v652
    %v655 = vtanh.pop %v654
    %657 = vrot.lane.b32.xlu0 %v655, 64
    %v658 = vpop.permute.xlu0 %657
    %v660 = vmul.f32 %v642, %v658
    %s661 = scalar_lea.vmem %s0, 12
    %v662 = vld [vmem:[%s661] sm:$0x3]
    %664 = vrot.lane.b32.xlu0 %v660, 58
    %v665 = vpop.permute.xlu0 %664
    %v667 = vsel %vm31, %v662, %v665
    %v669 = vsel %vm39, %v667, 0
    %671 = vmatprep.subr.mxu0 0.0
    %672 = vmatpush1.msra.mxu0 0.0
    %673 = vmatprep.subr.mxu0 0.0
    %674 = vmatpush1.msra.mxu0 0.0
    %675 = vmatprep.subr.mxu0 0.0
    %676 = vmatpush1.msra.mxu0 0.0
    %677 = vmatprep.subr.mxu0 0.0
    %678 = vmatpush1.msra.mxu0 0.0
    %679 = vmatprep.subr.mxu0 0.0
    %680 = vmatpush1.msra.mxu0 0.0
    %681 = vmatprep.subr.mxu0 0.0
    %682 = vmatpush1.msra.mxu0 0.0
    %683 = vmatprep.subr.mxu0 0.0
    %684 = vmatpush1.msra.mxu0 0.0
    %685 = vmatprep.subr.mxu0 0.0
    %686 = vmatpush1.msra.mxu0 0.0
    %687 = vmatprep.subr.mxu0 0.0
    %688 = vmatpush1.msra.mxu0 %v45
    %689 = vmatprep.subr.mxu0 0.0
    %690 = vmatpush1.msra.mxu0 %v27
    %691 = vmatprep.subr.mxu0 0.0
    %692 = vmatpush1.msra.mxu0 %v26
    %693 = vmatprep.subr.mxu0 0.0
    %694 = vmatpush1.msra.mxu0 %v25
    %695 = vmatprep.subr.mxu0 0.0
    %696 = vmatpush1.msra.mxu0 %v24
    %697 = vmatprep.subr.mxu0 0.0
    %698 = vmatpush1.msra.mxu0 %v23
    %699 = vmatprep.subr.mxu0 0.0
    %700 = vmatpush1.msra.mxu0 %v22
    %701 = vmatprep.subr.mxu0 0.0
    %702 = vmatpush1.msra.mxu0 %v21
    %703 = vmatprep.subr.mxu0 0.0
    %704 = vmatpush2.msra.mxu0 0.0
    %705 = vmatprep.subr.mxu0 0.0
    %706 = vmatpush2.msra.mxu0 0.0
    %707 = vmatprep.subr.mxu0 0.0
    %708 = vmatpush2.msra.mxu0 0.0
    %709 = vmatprep.subr.mxu0 0.0
    %710 = vmatpush2.msra.mxu0 0.0
    %711 = vmatprep.subr.mxu0 0.0
    %712 = vmatpush2.msra.mxu0 0.0
    %713 = vmatprep.subr.mxu0 0.0
    %714 = vmatpush2.msra.mxu0 0.0
    %715 = vmatprep.subr.mxu0 0.0
    %716 = vmatpush2.msra.mxu0 0.0
    %717 = vmatprep.subr.mxu0 0.0
    %718 = vmatpush2.msra.mxu0 0.0
    %719 = vmatprep.subr.mxu0 0.0
    %720 = vmatpush2.msra.mxu0 0.0
    %721 = vmatprep.subr.mxu0 0.0
    %722 = vmatpush2.msra.mxu0 0.0
    %723 = vmatprep.subr.mxu0 0.0
    %724 = vmatpush2.msra.mxu0 0.0
    %725 = vmatprep.subr.mxu0 0.0
    %726 = vmatpush2.msra.mxu0 0.0
    %727 = vmatprep.subr.mxu0 0.0
    %728 = vmatpush2.msra.mxu0 0.0
    %729 = vmatprep.subr.mxu0 0.0
    %730 = vmatpush2.msra.mxu0 0.0
    %731 = vmatprep.subr.mxu0 0.0
    %732 = vmatpush2.msra.mxu0 0.0
    %733 = vmatprep.subr.mxu0 0.0
    %734 = vmatpush2.msra.mxu0 0.0
    %735 = vmatprep.mubr.f32.mxu0 0.0
    %736 = vmatmul.mubr.f32.gmra.mxu0 %v669
    %v737 = vpop.f32.mrf.mxu0
    %v738 = vadd.f32 %v37, %v737
    %v739 = vpop.f32.mrf.mxu0
    %740 = vdwg.mxu0
    %v741 = vxor.u32 %v738, 2147483648
    %v742 = vmul.f32 %v741, 1.442695
    %v743 = vpow.pop %v742
    %v744 = vadd.f32 %v743, 1.0
    %v745 = vrcp.pop %v744
    %v746 = vmul.f32 1.0, %v745
    %v747 = vtanh.pop %v738
    %v748 = vmul.f32 %v746, %v654
    %750 = vrot.lane.b32.xlu0 %v747, 64
    %v751 = vpop.permute.xlu0 %750
    %v753 = vmul.f32 %v746, %v751
    %755 = vrot.lane.b32.xlu0 %v753, 32
    %v756 = vpop.permute.xlu0 %755
    %v758 = vadd.f32 %v748, %v756
    %v759 = vtanh.pop %v758
    %761 = vrot.lane.b32.xlu0 %v759, 64
    %v762 = vpop.permute.xlu0 %761
    %v764 = vmul.f32 %v746, %v762
    %s765 = scalar_lea.vmem %s0, 14
    %v766 = vld [vmem:[%s765] sm:$0x3]
    %768 = vrot.lane.b32.xlu0 %v764, 58
    %v769 = vpop.permute.xlu0 %768
    %v771 = vsel %vm31, %v766, %v769
    %v773 = vsel %vm39, %v771, 0
    %775 = vmatprep.subr.mxu0 0.0
    %776 = vmatpush1.msra.mxu0 0.0
    %777 = vmatprep.subr.mxu0 0.0
    %778 = vmatpush1.msra.mxu0 0.0
    %779 = vmatprep.subr.mxu0 0.0
    %780 = vmatpush1.msra.mxu0 0.0
    %781 = vmatprep.subr.mxu0 0.0
    %782 = vmatpush1.msra.mxu0 0.0
    %783 = vmatprep.subr.mxu0 0.0
    %784 = vmatpush1.msra.mxu0 0.0
    %785 = vmatprep.subr.mxu0 0.0
    %786 = vmatpush1.msra.mxu0 0.0
    %787 = vmatprep.subr.mxu0 0.0
    %788 = vmatpush1.msra.mxu0 0.0
    %789 = vmatprep.subr.mxu0 0.0
    %790 = vmatpush1.msra.mxu0 0.0
    %791 = vmatprep.subr.mxu0 0.0
    %792 = vmatpush1.msra.mxu0 %v45
    %793 = vmatprep.subr.mxu0 0.0
    %794 = vmatpush1.msra.mxu0 %v27
    %795 = vmatprep.subr.mxu0 0.0
    %796 = vmatpush1.msra.mxu0 %v26
    %797 = vmatprep.subr.mxu0 0.0
    %798 = vmatpush1.msra.mxu0 %v25
    %799 = vmatprep.subr.mxu0 0.0
    %800 = vmatpush1.msra.mxu0 %v24
    %801 = vmatprep.subr.mxu0 0.0
    %802 = vmatpush1.msra.mxu0 %v23
    %803 = vmatprep.subr.mxu0 0.0
    %804 = vmatpush1.msra.mxu0 %v22
    %805 = vmatprep.subr.mxu0 0.0
    %806 = vmatpush1.msra.mxu0 %v21
    %807 = vmatprep.subr.mxu0 0.0
    %808 = vmatpush2.msra.mxu0 0.0
    %809 = vmatprep.subr.mxu0 0.0
    %810 = vmatpush2.msra.mxu0 0.0
    %811 = vmatprep.subr.mxu0 0.0
    %812 = vmatpush2.msra.mxu0 0.0
    %813 = vmatprep.subr.mxu0 0.0
    %814 = vmatpush2.msra.mxu0 0.0
    %815 = vmatprep.subr.mxu0 0.0
    %816 = vmatpush2.msra.mxu0 0.0
    %817 = vmatprep.subr.mxu0 0.0
    %818 = vmatpush2.msra.mxu0 0.0
    %819 = vmatprep.subr.mxu0 0.0
    %820 = vmatpush2.msra.mxu0 0.0
    %821 = vmatprep.subr.mxu0 0.0
    %822 = vmatpush2.msra.mxu0 0.0
    %823 = vmatprep.subr.mxu0 0.0
    %824 = vmatpush2.msra.mxu0 0.0
    %825 = vmatprep.subr.mxu0 0.0
    %826 = vmatpush2.msra.mxu0 0.0
    %827 = vmatprep.subr.mxu0 0.0
    %828 = vmatpush2.msra.mxu0 0.0
    %829 = vmatprep.subr.mxu0 0.0
    %830 = vmatpush2.msra.mxu0 0.0
    %831 = vmatprep.subr.mxu0 0.0
    %832 = vmatpush2.msra.mxu0 0.0
    %833 = vmatprep.subr.mxu0 0.0
    %834 = vmatpush2.msra.mxu0 0.0
    %835 = vmatprep.subr.mxu0 0.0
    %836 = vmatpush2.msra.mxu0 0.0
    %837 = vmatprep.subr.mxu0 0.0
    %838 = vmatpush2.msra.mxu0 0.0
    %839 = vmatprep.mubr.f32.mxu0 0.0
    %840 = vmatmul.mubr.f32.gmra.mxu0 %v773
    %v841 = vpop.f32.mrf.mxu0
    %v842 = vadd.f32 %v37, %v841
    %v843 = vpop.f32.mrf.mxu0
    %844 = vdwg.mxu0
    %v845 = vxor.u32 %v842, 2147483648
    %v846 = vmul.f32 %v845, 1.442695
    %v847 = vpow.pop %v846
    %v848 = vadd.f32 %v847, 1.0
    %v849 = vrcp.pop %v848
    %v850 = vmul.f32 1.0, %v849
    %v851 = vtanh.pop %v842
    %v852 = vmul.f32 %v850, %v758
    %854 = vrot.lane.b32.xlu0 %v851, 64
    %v855 = vpop.permute.xlu0 %854
    %v857 = vmul.f32 %v850, %v855
    %859 = vrot.lane.b32.xlu0 %v857, 32
    %v860 = vpop.permute.xlu0 %859
    %v862 = vadd.f32 %v852, %v860
    %v863 = vtanh.pop %v862
    %865 = vrot.lane.b32.xlu0 %v863, 64
    %v866 = vpop.permute.xlu0 %865
    %v868 = vmul.f32 %v850, %v866
    %v869 = vld [vmem:[%s3] sm:$0xff]
    %v870 = vld [vmem:[%s3 + $0x8] sm:$0xff]
    %v871 = vld [vmem:[%s3 + $0x10] sm:$0xff]
    %v872 = vld [vmem:[%s3 + $0x18] sm:$0xff]
    %v873 = vld [vmem:[%s4] sm:$0x1]
    %v875 = vlaneseq
    %v876 = vshrl.u32 %v875, 7
    %v877 = vsub.s32 0, %v876
    %v878 = vrot.slane %v873, %v877
    %881 = vrot.lane.b32.xlu0 %v868, 32
    %v882 = vpop.permute.xlu0 %881
    %vm883 = vcmask 261120
    %v884 = vsel %vm883, %v882, 0
    %886 = vmatprep.subr.mxu0 0.0
    %887 = vmatpush1.msra.mxu0 0.0
    %888 = vmatprep.subr.mxu0 0.0
    %889 = vmatpush1.msra.mxu0 0.0
    %890 = vmatprep.subr.mxu0 0.0
    %891 = vmatpush1.msra.mxu0 0.0
    %892 = vmatprep.subr.mxu0 0.0
    %893 = vmatpush1.msra.mxu0 0.0
    %894 = vmatprep.subr.mxu0 0.0
    %895 = vmatpush1.msra.mxu0 0.0
    %896 = vmatprep.subr.mxu0 0.0
    %897 = vmatpush1.msra.mxu0 0.0
    %898 = vmatprep.subr.mxu0 0.0
    %899 = vmatpush1.msra.mxu0 0.0
    %900 = vmatprep.subr.mxu0 0.0
    %901 = vmatpush1.msra.mxu0 0.0
    %902 = vmatprep.subr.mxu0 0.0
    %903 = vmatpush1.msra.mxu0 0.0
    %904 = vmatprep.subr.mxu0 0.0
    %905 = vmatpush1.msra.mxu0 0.0
    %906 = vmatprep.subr.mxu0 0.0
    %907 = vmatpush1.msra.mxu0 0.0
    %908 = vmatprep.subr.mxu0 0.0
    %909 = vmatpush1.msra.mxu0 0.0
    %910 = vmatprep.subr.mxu0 0.0
    %911 = vmatpush1.msra.mxu0 %v872
    %912 = vmatprep.subr.mxu0 0.0
    %913 = vmatpush1.msra.mxu0 %v871
    %914 = vmatprep.subr.mxu0 0.0
    %915 = vmatpush1.msra.mxu0 %v870
    %916 = vmatprep.subr.mxu0 0.0
    %917 = vmatpush1.msra.mxu0 %v869
    %918 = vmatprep.subr.mxu0 0.0
    %919 = vmatpush2.msra.mxu0 0.0
    %920 = vmatprep.subr.mxu0 0.0
    %921 = vmatpush2.msra.mxu0 0.0
    %922 = vmatprep.subr.mxu0 0.0
    %923 = vmatpush2.msra.mxu0 0.0
    %924 = vmatprep.subr.mxu0 0.0
    %925 = vmatpush2.msra.mxu0 0.0
    %926 = vmatprep.subr.mxu0 0.0
    %927 = vmatpush2.msra.mxu0 0.0
    %928 = vmatprep.subr.mxu0 0.0
    %929 = vmatpush2.msra.mxu0 0.0
    %930 = vmatprep.subr.mxu0 0.0
    %931 = vmatpush2.msra.mxu0 0.0
    %932 = vmatprep.subr.mxu0 0.0
    %933 = vmatpush2.msra.mxu0 0.0
    %934 = vmatprep.subr.mxu0 0.0
    %935 = vmatpush2.msra.mxu0 0.0
    %936 = vmatprep.subr.mxu0 0.0
    %937 = vmatpush2.msra.mxu0 0.0
    %938 = vmatprep.subr.mxu0 0.0
    %939 = vmatpush2.msra.mxu0 0.0
    %940 = vmatprep.subr.mxu0 0.0
    %941 = vmatpush2.msra.mxu0 0.0
    %942 = vmatprep.subr.mxu0 0.0
    %943 = vmatpush2.msra.mxu0 0.0
    %944 = vmatprep.subr.mxu0 0.0
    %945 = vmatpush2.msra.mxu0 0.0
    %946 = vmatprep.subr.mxu0 0.0
    %947 = vmatpush2.msra.mxu0 0.0
    %948 = vmatprep.subr.mxu0 0.0
    %949 = vmatpush2.msra.mxu0 0.0
    %950 = vmatprep.mubr.f32.mxu0 0.0
    %951 = vmatmul.mubr.f32.gmra.mxu0 %v884
    %v952 = vpop.f32.mrf.mxu0
    %v953 = vadd.f32 %v878, %v952
    %v954 = vpop.f32.mrf.mxu0
    %955 = vdwg.mxu0
    %vm956 = vcmask 205824
    %957 = vst.msk [vmem:[#allocation2] sm:$0x3] %vm956, %v953
    // Predicated region
    $region22: #{text_lstm_forward.1} parent=1 // pred_check
      _
    $region23: #{text_lstm_forward.1} parent=1 // pred_check_branch
      %959 = sbr.rel (0) target = $region25
    $region24: #{text_lstm_forward.1} parent=1 // pred_region
      %s961 = ssub.s32 32, 32
      %962 = vsyncadd [#allocation3], %s961
      %s964 = sshll.u32 [#allocation2], 4
      %s965 = int_to_ptr.vmem [resolvable:$true] %s964
      %967 = dma.vmem_to_hbm [thread:$0]  %s965, 32, %s5, [#allocation3]
    $region25: #{text_lstm_forward.1} parent=1 // pred_fallthru
      _
    // Predicated region
    $region26: #{text_lstm_forward.1} parent=1 // pred_check
      _
    $region27: #{text_lstm_forward.1} parent=1 // pred_check_branch
      %969 = sbr.rel (0) target = $region29
    $region28: #{text_lstm_forward.1} parent=1 // pred_region
      %970 = dma.done [#allocation3], 32
    $region29: #{text_lstm_forward.1} parent=1 // pred_fallthru
      _
    %971 = vsyncpa [#allocation3], 1

</llo_original>
